<compile_context>
chip_gen: v7x
topology: tpu7x:2x2x1
jax: 0.10.0
libtpu: 0.0.40
codegen_flags: <defaults>
</compile_context>

<pallas_src>
import functools

import jax
import jax.numpy as jnp
from jax.experimental import pallas as pl
from jax.experimental.pallas import tpu as pltpu


def _round_up(x, m):
    return ((x + m - 1) // m) * m


def moe_group_ffn_kernel(tile_expert_ref,   # SMEM (G,) int32: expert id per row tile
                         tile_live_ref,     # SMEM (G,) int32: 1 if the tile holds routed rows
                         x_ref,             # (TM, D)  bf16 routed token activations
                         gw_ref,            # (TM, 1)  f32  per-row gate weight (0 on padding)
                         w1_ref,            # (D, TH)  bf16 W1 tile of the tile's expert
                         w3_ref,            # (D, TH)  bf16 W3 tile
                         w2_ref,            # (TH, D)  bf16 W2 tile
                         o_ref,             # (TM, D)  bf16 gate-weighted output
                         acc_ref):          # (TM, D)  f32 scratch accumulator
    """Grid = (row_tiles, H_tiles); one step = one expert-H-tile partial."""
    g = pl.program_id(0)
    hstep = pl.program_id(1)

    @pl.when(hstep == 0)
    def _():
        acc_ref[...] = jnp.zeros_like(acc_ref)

    @pl.when(tile_live_ref[g] > 0)                                  # skip MXU work on dead tiles
    def _():
        x = x_ref[...]                                              # (TM, D) bf16
        h1 = jnp.dot(x, w1_ref[...], preferred_element_type=jnp.float32)
        h3 = jnp.dot(x, w3_ref[...], preferred_element_type=jnp.float32)
        gated = (h1 * jax.nn.sigmoid(h1)) * h3                      # silu(h1) * h3, f32
        acc_ref[...] += jnp.dot(gated.astype(w2_ref.dtype), w2_ref[...],
                                preferred_element_type=jnp.float32)

    @pl.when(hstep == pl.num_programs(1) - 1)
    def _():
        # Gate weight applied in-kernel; padding / dead rows carry gw = 0.
        o_ref[...] = (acc_ref[...] * gw_ref[...]).astype(o_ref.dtype)


def moe_layer_pallas(x, gate_w, w1, w3, w2, num_experts_per_tok, *,
                     tm=256, th=512, compute_dtype=jnp.bfloat16):
    """x: (T, D); gate_w: (E, D); w1/w3: (E, D, H); w2: (E, H, D).

    Defaults target v6e/v7x (tm=256, th=512).  v5e: tm=128 also fills its 128-wide MXU.
    """
    T, D = x.shape
    E, _, H = w1.shape
    k = num_experts_per_tok

    th = min(th, H)
    assert H % th == 0 and th % 128 == 0, "th must divide H and be a multiple of 128"
    assert tm % 16 == 0, "tm must be a multiple of 16 (bf16 sublane packing)"
    assert D % 128 == 0, "model dim must be lane-aligned"
    nh = H // th

    # Weights should already be stored in compute_dtype at load time; cast only if not.
    if w1.dtype != compute_dtype:
        w1 = w1.astype(compute_dtype)
    if w3.dtype != compute_dtype:
        w3 = w3.astype(compute_dtype)
    if w2.dtype != compute_dtype:
        w2 = w2.astype(compute_dtype)

    # ---------------- gating glue (tiny: T x E) ----------------
    gate_logits = x.astype(jnp.float32) @ gate_w.astype(jnp.float32).T   # (T, E)
    topk_val, topk_idx = jax.lax.top_k(gate_logits, k)                   # (T, k)
    topk_w = jax.nn.softmax(topk_val, axis=-1).astype(x.dtype)           # softmax over the top-k

    # ---------------- grouped (sorted) dispatch ----------------
    A = T * k                                      # number of (token, expert) assignments
    P = _round_up(A, tm) + E * tm                  # static upper bound on padded rows
    G = P // tm                                    # number of row tiles

    flat_e = topk_idx.reshape(-1).astype(jnp.int32)                      # (A,)
    flat_t = jnp.arange(A, dtype=jnp.int32) // k                         # (A,)
    flat_w = topk_w.reshape(-1).astype(jnp.float32)                      # (A,)

    counts = jnp.bincount(flat_e, length=E).astype(jnp.int32)            # (E,)
    padded_counts = _round_up(counts, tm)
    zero = jnp.zeros((1,), jnp.int32)
    unpadded_off = jnp.concatenate([zero, jnp.cumsum(counts)]).astype(jnp.int32)       # (E+1,)
    padded_off = jnp.concatenate([zero, jnp.cumsum(padded_counts)]).astype(jnp.int32)  # (E+1,)

    order = jnp.argsort(flat_e, stable=True)                             # stable sort by expert
    sorted_e = flat_e[order]
    sorted_t = flat_t[order]
    sorted_w = flat_w[order]
    rank = jnp.arange(A, dtype=jnp.int32) - unpadded_off[sorted_e]       # rank within group
    dest = padded_off[sorted_e] + rank                                   # row in padded buffer

    row_token = jnp.zeros((P,), jnp.int32).at[dest].set(sorted_t)        # padding -> token 0
    row_gw = jnp.zeros((P, 1), jnp.float32).at[dest, 0].set(sorted_w)    # padding -> weight 0
    assign_row = jnp.zeros((A,), jnp.int32).at[order].set(dest)          # inverse permutation

    tile_start = jnp.arange(G, dtype=jnp.int32) * tm
    tile_expert = jnp.searchsorted(padded_off[1:], tile_start, side="right")
    tile_expert = jnp.minimum(tile_expert, E - 1).astype(jnp.int32)      # (G,)
    tile_live = (tile_start < padded_off[E]).astype(jnp.int32)           # (G,) 0 -> dead tile

    x_sorted = x[row_token].astype(compute_dtype)                        # (P, D)

    # ---------------- pallas_call ----------------
    try:
        vmem_cap = pltpu.get_tpu_info().vmem_capacity_bytes
    except Exception:
        vmem_cap = 64 * 1024 * 1024
    vmem_limit = max(32 * 1024 * 1024, min(int(vmem_cap * 0.85), 112 * 1024 * 1024))

    # Dead tiles keep the weight block index constant (h -> 0), so they trigger at most
    # one extra weight-tile DMA instead of re-streaming the whole clamped expert.
    grid_spec = pltpu.PrefetchScalarGridSpec(
        num_scalar_prefetch=2,
        grid=(G, nh),                                                     # H innermost (reduction)
        in_specs=[
            pl.BlockSpec((tm, D), lambda g, h, te, lv: (g, 0)),           # routed token rows
            pl.BlockSpec((tm, 1), lambda g, h, te, lv: (g, 0)),           # per-row gate weight
            pl.BlockSpec((None, D, th),
                         lambda g, h, te, lv: (te[g], 0, h * lv[g])),     # W1 tile
            pl.BlockSpec((None, D, th),
                         lambda g, h, te, lv: (te[g], 0, h * lv[g])),     # W3 tile
            pl.BlockSpec((None, th, D),
                         lambda g, h, te, lv: (te[g], h * lv[g], 0)),     # W2 tile
        ],
        out_specs=pl.BlockSpec((tm, D), lambda g, h, te, lv: (g, 0)),     # lane-dense output
        scratch_shapes=[pltpu.VMEM((tm, D), jnp.float32)],                # f32 accumulator
    )
    out_sorted = pl.pallas_call(
        moe_group_ffn_kernel,
        out_shape=jax.ShapeDtypeStruct((P, D), compute_dtype),
        grid_spec=grid_spec,
        compiler_params=pltpu.CompilerParams(
            dimension_semantics=("parallel", "arbitrary"),                # megacore row-tile split
            vmem_limit_bytes=vmem_limit,
        ),
    )(tile_expert, tile_live, x_sorted, row_gw, w1, w3, w2)               # (P, D) bf16

    # ---------------- un-permute via gather + sum over k ----------------
    gathered = out_sorted[assign_row].reshape(T, k, D).astype(jnp.float32)
    y = gathered.sum(axis=1)
    # TODO(synk): dist.all_reduce(y) across expert-parallel shards would be a lax.psum;
    # single-device no-op here (all experts local, expert_start_idx=0, expert_end_idx=E).
    return y.astype(x.dtype)


def moe_layer_reference(x, gate_w, w1, w3, w2, k, compute_dtype=jnp.bfloat16):
    """Pure-JAX dense reference with matching bf16 matmul precision."""
    T, D = x.shape
    E = w1.shape[0]
    logits = x.astype(jnp.float32) @ gate_w.astype(jnp.float32).T
    tv, ti = jax.lax.top_k(logits, k)
    tw = jax.nn.softmax(tv, axis=-1).astype(x.dtype)
    dense_g = jnp.zeros((T, E), jnp.float32).at[
        jnp.arange(T)[:, None], ti].set(tw.astype(jnp.float32))
    xb = x.astype(compute_dtype)
    y = jnp.zeros((T, D), jnp.float32)
    for e in range(E):
        h1 = jnp.dot(xb, w1[e].astype(compute_dtype), preferred_element_type=jnp.float32)
        h3 = jnp.dot(xb, w3[e].astype(compute_dtype), preferred_element_type=jnp.float32)
        h = (h1 * jax.nn.sigmoid(h1)) * h3
        out_e = jnp.dot(h.astype(compute_dtype), w2[e].astype(compute_dtype),
                        preferred_element_type=jnp.float32)
        y = y + dense_g[:, e:e + 1] * out_e
    return y.astype(x.dtype)


if __name__ == "__main__":
    # Small shapes consistent with the module: 16 tokens, model dim 128, FFN hidden 256,
    # 8 experts, top-2 routing (Mixtral-8x7B style, scaled down).
    T, D, H, E, K = 16, 128, 256, 8, 2

    key = jax.random.PRNGKey(0)
    kx, kg, k1, k3, k2 = jax.random.split(key, 5)
    x = jax.random.normal(kx, (T, D), dtype=jnp.float32)
    gate_w = jax.random.normal(kg, (E, D), dtype=jnp.float32) * 0.1
    w1 = jax.random.normal(k1, (E, D, H), dtype=jnp.float32) * 0.1
    w3 = jax.random.normal(k3, (E, D, H), dtype=jnp.float32) * 0.1
    w2 = jax.random.normal(k2, (E, H, D), dtype=jnp.float32) * 0.1

    moe_fn = jax.jit(functools.partial(moe_layer_pallas, num_experts_per_tok=K,
                                       tm=16, th=256))
    y = jax.block_until_ready(moe_fn(x, gate_w, w1, w3, w2))

    y_ref = moe_layer_reference(x, gate_w, w1, w3, w2, K)
    assert y.shape == x.shape
    yf = y.astype(jnp.float32)
    rf = y_ref.astype(jnp.float32)
    max_err = float(jnp.max(jnp.abs(yf - rf)))
    assert jnp.allclose(yf, rf, rtol=2e-2, atol=2e-2), f"mismatch vs reference (max_err={max_err})"
    print("KERNEL_OK")
</pallas_src>

<mosaic_0001>
module attributes {stable_mosaic.version = 11 : i64} {
  func.func private @main(%arg0: i32) attributes {dimension_semantics = [#tpu.dimension_semantics<core_parallel>], iteration_bounds = array<i64: 2>, tpu.core_type = #tpu.core_type<sc_scalar_subcore>, window_params = []} {
    return
  }
}

module attributes {stable_mosaic.version = 11 : i64} {
  func.func private @main(%arg0: i32) attributes {dimension_semantics = [#tpu.dimension_semantics<core_parallel>], iteration_bounds = array<i64: 2>, tpu.core_type = #tpu.core_type<sc_scalar_subcore>, window_params = []} {
    return
  }
}

module attributes {stable_mosaic.version = 11 : i64} {
  func.func @moe_group_ffn_kernel(%arg0: i32, %arg1: i32, %arg2: memref<10xi32, #tpu.memory_space<smem>>, %arg3: memref<10xi32, #tpu.memory_space<smem>>, %arg4: memref<16x128xbf16, #tpu.memory_space<vmem>>, %arg5: memref<16x1xf32, #tpu.memory_space<vmem>>, %arg6: memref<1x128x256xbf16, #tpu.memory_space<vmem>>, %arg7: memref<1x128x256xbf16, #tpu.memory_space<vmem>>, %arg8: memref<1x256x128xbf16, #tpu.memory_space<vmem>>, %arg9: memref<16x128xbf16, #tpu.memory_space<vmem>>, %arg10: memref<16x128xf32, #tpu.memory_space<vmem>>) attributes {dimension_semantics = [#tpu.dimension_semantics<parallel>, #tpu.dimension_semantics<arbitrary>], iteration_bounds = array<i64: 10, 1>, scalar_prefetch = 2 : i64, scratch_operands = 1 : i64, tpu.core_type = #tpu.core_type<tc>, window_params = [{transform_indices = @transform_0, window_bounds = array<i64: 16, 128>}, {transform_indices = @transform_1, window_bounds = array<i64: 16, 1>}, {transform_indices = @transform_2, window_bounds = array<i64: 1, 128, 256>}, {transform_indices = @transform_3, window_bounds = array<i64: 1, 128, 256>}, {transform_indices = @transform_4, window_bounds = array<i64: 1, 256, 128>}, {transform_indices = @transform_5, window_bounds = array<i64: 16, 128>}]} {
    %c0_i32 = arith.constant 0 : i32
    %0 = arith.cmpi eq, %arg1, %c0_i32 : i32
    %1 = arith.extui %0 : i1 to i32
    %c0_i32_0 = arith.constant 0 : i32
    %2 = arith.cmpi ne, %1, %c0_i32_0 : i32
    scf.if %2 {
      %cst = arith.constant 0.000000e+00 : f32
      %11 = vector.broadcast %cst : f32 to vector<16x128xf32>
      %c0 = arith.constant 0 : index
      %c0_5 = arith.constant 0 : index
      %12 = vector.load %arg10[%c0, %c0_5] : memref<16x128xf32, #tpu.memory_space<vmem>>, vector<16x128xf32>
      tpu.vector_store %arg10[%c0, %c0_5], %11 {strides = array<i32>} : memref<16x128xf32, #tpu.memory_space<vmem>>, vector<16x128xf32>,
    } else {
    }
    %3 = arith.index_cast %arg0 : i32 to index
    %4 = memref.load %arg3[%3] : memref<10xi32, #tpu.memory_space<smem>>
    %c0_i32_1 = arith.constant 0 : i32
    %5 = arith.cmpi sgt, %4, %c0_i32_1 : i32
    %6 = arith.extui %5 : i1 to i32
    %c0_i32_2 = arith.constant 0 : i32
    %7 = arith.cmpi ne, %6, %c0_i32_2 : i32
    scf.if %7 {
      %c0 = arith.constant 0 : index
      %c0_5 = arith.constant 0 : index
      %11 = vector.load %arg4[%c0, %c0_5] : memref<16x128xbf16, #tpu.memory_space<vmem>>, vector<16x128xbf16>
      %c0_6 = arith.constant 0 : index
      %c0_7 = arith.constant 0 : index
      %c0_8 = arith.constant 0 : index
      %12 = vector.load %arg6[%c0_6, %c0_7, %c0_8] : memref<1x128x256xbf16, #tpu.memory_space<vmem>>, vector<1x128x256xbf16>
      %13 = vector.shape_cast %12 : vector<1x128x256xbf16> to vector<128x256xbf16>
      %cst = arith.constant dense<0.000000e+00> : vector<16x256xf32>
      %14 = tpu.matmul %11, %13, %cst {dimension_numbers = #tpu.dot_dimension_numbers<[1], [0], [0], [1], [0, 0, 1, 1], [], []>} : vector<16x128xbf16>, vector<128x256xbf16>, vector<16x256xf32> -> vector<16x256xf32>
      %c0_9 = arith.constant 0 : index
      %c0_10 = arith.constant 0 : index
      %c0_11 = arith.constant 0 : index
      %15 = vector.load %arg7[%c0_9, %c0_10, %c0_11] : memref<1x128x256xbf16, #tpu.memory_space<vmem>>, vector<1x128x256xbf16>
      %16 = vector.shape_cast %15 : vector<1x128x256xbf16> to vector<128x256xbf16>
      %cst_12 = arith.constant dense<0.000000e+00> : vector<16x256xf32>
      %17 = tpu.matmul %11, %16, %cst_12 {dimension_numbers = #tpu.dot_dimension_numbers<[1], [0], [0], [1], [0, 0, 1, 1], [], []>} : vector<16x128xbf16>, vector<128x256xbf16>, vector<16x256xf32> -> vector<16x256xf32>
      %18 = arith.negf %14 : vector<16x256xf32>
      %19 = math.exp %18 : vector<16x256xf32>
      %cst_13 = arith.constant 1.000000e+00 : f32
      %20 = vector.broadcast %cst_13 : f32 to vector<16x256xf32>
      %21 = arith.addf %20, %19 : vector<16x256xf32>
      %22 = arith.divf %20, %21 : vector<16x256xf32>
      %23 = arith.mulf %14, %22 : vector<16x256xf32>
      %24 = arith.mulf %23, %17 : vector<16x256xf32>
      %c0_14 = arith.constant 0 : index
      %c0_15 = arith.constant 0 : index
      %25 = vector.load %arg10[%c0_14, %c0_15] : memref<16x128xf32, #tpu.memory_space<vmem>>, vector<16x128xf32>
      %26 = arith.truncf %24 : vector<16x256xf32> to vector<16x256xbf16>
      %c0_16 = arith.constant 0 : index
      %c0_17 = arith.constant 0 : index
      %c0_18 = arith.constant 0 : index
      %27 = vector.load %arg8[%c0_16, %c0_17, %c0_18] : memref<1x256x128xbf16, #tpu.memory_space<vmem>>, vector<1x256x128xbf16>
      %28 = vector.shape_cast %27 : vector<1x256x128xbf16> to vector<256x128xbf16>
      %cst_19 = arith.constant dense<0.000000e+00> : vector<16x128xf32>
      %29 = tpu.matmul %26, %28, %cst_19 {dimension_numbers = #tpu.dot_dimension_numbers<[1], [0], [0], [1], [0, 0, 1, 1], [], []>} : vector<16x256xbf16>, vector<256x128xbf16>, vector<16x128xf32> -> vector<16x128xf32>
      %30 = arith.addf %25, %29 : vector<16x128xf32>
      %c0_20 = arith.constant 0 : index
      %c0_21 = arith.constant 0 : index
      %31 = vector.load %arg10[%c0_20, %c0_21] : memref<16x128xf32, #tpu.memory_space<vmem>>, vector<16x128xf32>
      tpu.vector_store %arg10[%c0_20, %c0_21], %30 {strides = array<i32>} : memref<16x128xf32, #tpu.memory_space<vmem>>, vector<16x128xf32>,
    } else {
    }
    %c0_i32_3 = arith.constant 0 : i32
    %8 = arith.cmpi eq, %arg1, %c0_i32_3 : i32
    %9 = arith.extui %8 : i1 to i32
    %c0_i32_4 = arith.constant 0 : i32
    %10 = arith.cmpi ne, %9, %c0_i32_4 : i32
    scf.if %10 {
      %c0 = arith.constant 0 : index
      %c0_5 = arith.constant 0 : index
      %11 = vector.load %arg10[%c0, %c0_5] : memref<16x128xf32, #tpu.memory_space<vmem>>, vector<16x128xf32>
      %c0_6 = arith.constant 0 : index
      %c0_7 = arith.constant 0 : index
      %12 = vector.load %arg5[%c0_6, %c0_7] : memref<16x1xf32, #tpu.memory_space<vmem>>, vector<16x1xf32>
      %13 = vector.broadcast %12 : vector<16x1xf32> to vector<16x128xf32>
      %14 = arith.mulf %11, %13 : vector<16x128xf32>
      %15 = arith.truncf %14 : vector<16x128xf32> to vector<16x128xbf16>
      %c0_8 = arith.constant 0 : index
      %c0_9 = arith.constant 0 : index
      %16 = vector.load %arg9[%c0_8, %c0_9] : memref<16x128xbf16, #tpu.memory_space<vmem>>, vector<16x128xbf16>
      tpu.vector_store %arg9[%c0_8, %c0_9], %15 {strides = array<i32>} : memref<16x128xbf16, #tpu.memory_space<vmem>>, vector<16x128xbf16>,
    } else {
    }
    return
  }
  func.func @transform_0(%arg0: i32, %arg1: i32, %arg2: memref<10xi32, #tpu.memory_space<smem>>, %arg3: memref<10xi32, #tpu.memory_space<smem>>) -> (i32, i32) {
    %c0_i32 = arith.constant 0 : i32
    %c0_i32_0 = arith.constant 0 : i32
    return %arg0, %c0_i32 : i32, i32
  }
  func.func @transform_1(%arg0: i32, %arg1: i32, %arg2: memref<10xi32, #tpu.memory_space<smem>>, %arg3: memref<10xi32, #tpu.memory_space<smem>>) -> (i32, i32) {
    %c0_i32 = arith.constant 0 : i32
    %c0_i32_0 = arith.constant 0 : i32
    return %arg0, %c0_i32 : i32, i32
  }
  func.func @transform_2(%arg0: i32, %arg1: i32, %arg2: memref<10xi32, #tpu.memory_space<smem>>, %arg3: memref<10xi32, #tpu.memory_space<smem>>) -> (i32, i32, i32) {
    %0 = arith.index_cast %arg0 : i32 to index
    %1 = memref.load %arg2[%0] : memref<10xi32, #tpu.memory_space<smem>>
    %2 = arith.index_cast %arg0 : i32 to index
    %3 = memref.load %arg3[%2] : memref<10xi32, #tpu.memory_space<smem>>
    %4 = arith.muli %arg1, %3 : i32
    %c0_i32 = arith.constant 0 : i32
    %c0_i32_0 = arith.constant 0 : i32
    return %1, %c0_i32, %4 : i32, i32, i32
  }
  func.func @transform_3(%arg0: i32, %arg1: i32, %arg2: memref<10xi32, #tpu.memory_space<smem>>, %arg3: memref<10xi32, #tpu.memory_space<smem>>) -> (i32, i32, i32) {
    %0 = arith.index_cast %arg0 : i32 to index
    %1 = memref.load %arg2[%0] : memref<10xi32, #tpu.memory_space<smem>>
    %2 = arith.index_cast %arg0 : i32 to index
    %3 = memref.load %arg3[%2] : memref<10xi32, #tpu.memory_space<smem>>
    %4 = arith.muli %arg1, %3 : i32
    %c0_i32 = arith.constant 0 : i32
    %c0_i32_0 = arith.constant 0 : i32
    return %1, %c0_i32, %4 : i32, i32, i32
  }
  func.func @transform_4(%arg0: i32, %arg1: i32, %arg2: memref<10xi32, #tpu.memory_space<smem>>, %arg3: memref<10xi32, #tpu.memory_space<smem>>) -> (i32, i32, i32) {
    %0 = arith.index_cast %arg0 : i32 to index
    %1 = memref.load %arg2[%0] : memref<10xi32, #tpu.memory_space<smem>>
    %2 = arith.index_cast %arg0 : i32 to index
    %3 = memref.load %arg3[%2] : memref<10xi32, #tpu.memory_space<smem>>
    %4 = arith.muli %arg1, %3 : i32
    %c0_i32 = arith.constant 0 : i32
    %c0_i32_0 = arith.constant 0 : i32
    return %1, %4, %c0_i32 : i32, i32, i32
  }
  func.func @transform_5(%arg0: i32, %arg1: i32, %arg2: memref<10xi32, #tpu.memory_space<smem>>, %arg3: memref<10xi32, #tpu.memory_space<smem>>) -> (i32, i32) {
    %c0_i32 = arith.constant 0 : i32
    %c0_i32_0 = arith.constant 0 : i32
    return %arg0, %c0_i32 : i32, i32
  }
}

</mosaic_0001>

<llo_original>
// kernel: custom-call
$region0: #{custom-call}
  %s0 = inlined_call_operand.vmem [shape: u32[10], index: 0, kind: output, shape index: {}]

// kernel: moe_layer_pallas.1
$region0: #{moe_layer_pallas.1}
  #allocation0 [shape = 'u32[]', space=smem, size = 0x4, offset = 0x4, fixed_abs, tag = 'smem constant byte address 0x4 - core index']
  #allocation1 [shape = 'u32[144,128]{1,0:T(1,128)}', space=vmem, size = 0x12000, scoped, tag = 'internal scratch']
  #allocation2 [shape = 'f32[16,128]{1,0:T(8,128)}', space=vmem, size = 0x2000, scoped, tag = 'scratch operand']
  #allocation3 [shape = 's32[1]{0}', space=sflag, size = 0x4, scoped, tag = 'scoped memory for moe_layer_pallas.1']
  #allocation4 [shape = 'u8[512]{0}', space=smem, size = 0x200, scoped, tag = 'prefetched SMEM operand 0']
  #allocation5 [shape = 'u8[512]{0}', space=smem, size = 0x200, scoped, tag = 'prefetched SMEM operand 1']
  %s0 = inlined_call_operand.vmem [shape: s32[10], index: 0, kind: input, shape index: {}]
  %s1 = inlined_call_operand.vmem [shape: s32[10], index: 1, kind: input, shape index: {}]
  %s2 = inlined_call_operand.vmem [shape: bf16[160,128], index: 2, kind: input, shape index: {}]
  %s3 = inlined_call_operand.vmem [shape: f32[160,1], index: 3, kind: input, shape index: {}]
  %s4 = inlined_call_operand.vmem [shape: bf16[8,128,256], index: 4, kind: input, shape index: {}]
  %s5 = inlined_call_operand.vmem [shape: bf16[8,128,256], index: 5, kind: input, shape index: {}]
  %s6 = inlined_call_operand.vmem [shape: bf16[8,256,128], index: 6, kind: input, shape index: {}]
  %s7 = inlined_call_operand.vmem [shape: bf16[160,128], index: 7, kind: output, shape index: {}]
  %s8 = sld [smem:[#allocation0]]
  $region65: #{moe_layer_pallas.1} parent=0
    _
  %s10 = ssub.s32 1, %s8
  %s11 = scalar_select 0, %s10, %s8
  %s12 = sshll.u32 %s0, 4
  %s13 = int_to_ptr.vmem [resolvable:$true] %s12
  %15 = dma.vmem_to_smem %s13, 16, [#allocation4], [#allocation3]
  %s16 = sshll.u32 %s1, 4
  %s17 = int_to_ptr.vmem [resolvable:$true] %s16
  %19 = dma.vmem_to_smem %s17, 16, [#allocation5], [#allocation3]
  %20 = dma.done [#allocation3], 32
  %21 = sfence
  loop: start=0, step=1, limit=12
  $region2: #{moe_layer_pallas.1} parent=0 // loop_pre_header
    _
  $region3: #{moe_layer_pallas.1} parent=0 // loop_header
    %s23 = sphi 0, %s27
    %p24 = scmp.ge.s32.totalorder %s23, 12
    %s30 = sphi 0, %s42
    %s31 = sphi 0, %s38
    %s32 = sphi 0, %s30
    %s33 = sphi 0, %s31
    %s34 = sphi 0, %s32
    %s35 = sphi 0, %s33
    %s45 = sphi 0, %s47
    %s48 = sphi 0, %s45
    %s49 = sphi 0, %s48
    %s65 = sphi 0, %s49
    %s71 = sphi 0, %s73
    %s74 = sphi 0, %s71
    %s75 = sphi 0, %s74
    %s91 = sphi 0, %s75
    %s105 = sphi 0, %s107
    %s108 = sphi 0, %s105
    %s109 = sphi 0, %s108
    %s125 = sphi 0, %s109
    %s139 = sphi 0, %s141
    %s142 = sphi 0, %s139
    %s143 = sphi 0, %s142
    %s159 = sphi 0, %s143
    %s173 = sphi 0, %s175
    %s176 = sphi 0, %s173
    %s177 = sphi 0, %s176
    %s193 = sphi 0, %s177
    %s199 = sphi 0, %s201
    %s202 = sphi 0, %s199
    %s203 = sphi 0, %s202
    %s219 = sphi 0, %s203
  $region4: #{moe_layer_pallas.1} parent=0 // loop_header_branch
    %26 = sbr.rel (%p24) target = $region8
  $region5: #{moe_layer_pallas.1} parent=0 // loop_body
    %s28 = ssub.s32 %s23, 1
    %s29 = ssub.s32 %s23, 2
    %s36 = sadd.s32 1, %s31
    %p37 = scmp.ge.s32.totalorder %s36, 1
    %s38 = scalar_select %p37, 0, %s36
    %s39 = sadd.s32 1, %s30
    %s40 = scalar_select %p37, %s39, %s30
    %p41 = scmp.ge.s32.totalorder %s40, 10
    %s42 = scalar_select %p41, 0, %s40
    %s43 = ssub.s32 %s30, %s42
    %p44 = scmp.eq.s32.totalorder %s43, 0
    %s46 = sadd.s32 %s45, 1
    %s47 = scalar_select %p44, %s45, %s46
    %p50 = pneg %p44
    %p51 = scmp.eq.s32.totalorder %s23, 9
    %p52 = por %p50, %p51
    %p53 = scmp.ne.s32.totalorder %s45, %s48
    %p54 = scmp.eq.s32.totalorder %s23, 0
    %p55 = por %p53, %p54
    %p56 = scmp.ne.s32.totalorder %s45, %s48
    %p57 = scmp.eq.s32.totalorder %s28, 9
    %p58 = por %p56, %p57
    %p59 = scmp.ne.s32.totalorder %s48, %s49
    %p60 = scmp.eq.s32.totalorder %s28, 0
    %p61 = por %p59, %p60
    %p62 = scmp.ne.s32.totalorder %s48, %s49
    %p63 = scmp.eq.s32.totalorder %s29, 9
    %p64 = por %p62, %p63
    %p66 = scmp.ne.s32.totalorder %s49, %s65
    %p67 = scmp.eq.s32.totalorder %s29, 0
    %p68 = por %p66, %p67
    %s69 = ssub.s32 %s30, %s42
    %p70 = scmp.eq.s32.totalorder %s69, 0
    %s72 = sadd.s32 %s71, 1
    %s73 = scalar_select %p70, %s71, %s72
    %p76 = pneg %p70
    %p77 = scmp.eq.s32.totalorder %s23, 9
    %p78 = por %p76, %p77
    %p79 = scmp.ne.s32.totalorder %s71, %s74
    %p80 = scmp.eq.s32.totalorder %s23, 0
    %p81 = por %p79, %p80
    %p82 = scmp.ne.s32.totalorder %s71, %s74
    %p83 = scmp.eq.s32.totalorder %s28, 9
    %p84 = por %p82, %p83
    %p85 = scmp.ne.s32.totalorder %s74, %s75
    %p86 = scmp.eq.s32.totalorder %s28, 0
    %p87 = por %p85, %p86
    %p88 = scmp.ne.s32.totalorder %s74, %s75
    %p89 = scmp.eq.s32.totalorder %s29, 9
    %p90 = por %p88, %p89
    %p92 = scmp.ne.s32.totalorder %s75, %s91
    %p93 = scmp.eq.s32.totalorder %s29, 0
    %p94 = por %p92, %p93
    %s95 = sld [smem:[#allocation4 + %s30]]
    %s96 = sld [smem:[#allocation5 + %s30]]
    %s97 = smul.u32 %s31, %s96
    %s98 = sld [smem:[#allocation4 + %s42]]
    %s99 = sld [smem:[#allocation5 + %s42]]
    %s100 = smul.u32 %s38, %s99
    %s101 = ssub.s32 %s95, %s98
    %s102 = ssub.s32 %s97, %s100
    %s103 = sor.u32 %s101, %s102
    %p104 = scmp.eq.s32.totalorder %s103, 0
    %s106 = sadd.s32 %s105, 1
    %s107 = scalar_select %p104, %s105, %s106
    %p110 = pneg %p104
    %p111 = scmp.eq.s32.totalorder %s23, 9
    %p112 = por %p110, %p111
    %p113 = scmp.ne.s32.totalorder %s105, %s108
    %p114 = scmp.eq.s32.totalorder %s23, 0
    %p115 = por %p113, %p114
    %p116 = scmp.ne.s32.totalorder %s105, %s108
    %p117 = scmp.eq.s32.totalorder %s28, 9
    %p118 = por %p116, %p117
    %p119 = scmp.ne.s32.totalorder %s108, %s109
    %p120 = scmp.eq.s32.totalorder %s28, 0
    %p121 = por %p119, %p120
    %p122 = scmp.ne.s32.totalorder %s108, %s109
    %p123 = scmp.eq.s32.totalorder %s29, 9
    %p124 = por %p122, %p123
    %p126 = scmp.ne.s32.totalorder %s109, %s125
    %p127 = scmp.eq.s32.totalorder %s29, 0
    %p128 = por %p126, %p127
    %s129 = sld [smem:[#allocation4 + %s30]]
    %s130 = sld [smem:[#allocation5 + %s30]]
    %s131 = smul.u32 %s31, %s130
    %s132 = sld [smem:[#allocation4 + %s42]]
    %s133 = sld [smem:[#allocation5 + %s42]]
    %s134 = smul.u32 %s38, %s133
    %s135 = ssub.s32 %s129, %s132
    %s136 = ssub.s32 %s131, %s134
    %s137 = sor.u32 %s135, %s136
    %p138 = scmp.eq.s32.totalorder %s137, 0
    %s140 = sadd.s32 %s139, 1
    %s141 = scalar_select %p138, %s139, %s140
    %p144 = pneg %p138
    %p145 = scmp.eq.s32.totalorder %s23, 9
    %p146 = por %p144, %p145
    %p147 = scmp.ne.s32.totalorder %s139, %s142
    %p148 = scmp.eq.s32.totalorder %s23, 0
    %p149 = por %p147, %p148
    %p150 = scmp.ne.s32.totalorder %s139, %s142
    %p151 = scmp.eq.s32.totalorder %s28, 9
    %p152 = por %p150, %p151
    %p153 = scmp.ne.s32.totalorder %s142, %s143
    %p154 = scmp.eq.s32.totalorder %s28, 0
    %p155 = por %p153, %p154
    %p156 = scmp.ne.s32.totalorder %s142, %s143
    %p157 = scmp.eq.s32.totalorder %s29, 9
    %p158 = por %p156, %p157
    %p160 = scmp.ne.s32.totalorder %s143, %s159
    %p161 = scmp.eq.s32.totalorder %s29, 0
    %p162 = por %p160, %p161
    %s163 = sld [smem:[#allocation4 + %s30]]
    %s164 = sld [smem:[#allocation5 + %s30]]
    %s165 = smul.u32 %s31, %s164
    %s166 = sld [smem:[#allocation4 + %s42]]
    %s167 = sld [smem:[#allocation5 + %s42]]
    %s168 = smul.u32 %s38, %s167
    %s169 = ssub.s32 %s163, %s166
    %s170 = ssub.s32 %s165, %s168
    %s171 = sor.u32 %s169, %s170
    %p172 = scmp.eq.s32.totalorder %s171, 0
    %s174 = sadd.s32 %s173, 1
    %s175 = scalar_select %p172, %s173, %s174
    %p178 = pneg %p172
    %p179 = scmp.eq.s32.totalorder %s23, 9
    %p180 = por %p178, %p179
    %p181 = scmp.ne.s32.totalorder %s173, %s176
    %p182 = scmp.eq.s32.totalorder %s23, 0
    %p183 = por %p181, %p182
    %p184 = scmp.ne.s32.totalorder %s173, %s176
    %p185 = scmp.eq.s32.totalorder %s28, 9
    %p186 = por %p184, %p185
    %p187 = scmp.ne.s32.totalorder %s176, %s177
    %p188 = scmp.eq.s32.totalorder %s28, 0
    %p189 = por %p187, %p188
    %p190 = scmp.ne.s32.totalorder %s176, %s177
    %p191 = scmp.eq.s32.totalorder %s29, 9
    %p192 = por %p190, %p191
    %p194 = scmp.ne.s32.totalorder %s177, %s193
    %p195 = scmp.eq.s32.totalorder %s29, 0
    %p196 = por %p194, %p195
    %s197 = ssub.s32 %s30, %s42
    %p198 = scmp.eq.s32.totalorder %s197, 0
    %s200 = sadd.s32 %s199, 1
    %s201 = scalar_select %p198, %s199, %s200
    %p204 = pneg %p198
    %p205 = scmp.eq.s32.totalorder %s23, 9
    %p206 = por %p204, %p205
    %p207 = scmp.ne.s32.totalorder %s199, %s202
    %p208 = scmp.eq.s32.totalorder %s23, 0
    %p209 = por %p207, %p208
    %p210 = scmp.ne.s32.totalorder %s199, %s202
    %p211 = scmp.eq.s32.totalorder %s28, 9
    %p212 = por %p210, %p211
    %p213 = scmp.ne.s32.totalorder %s202, %s203
    %p214 = scmp.eq.s32.totalorder %s28, 0
    %p215 = por %p213, %p214
    %p216 = scmp.ne.s32.totalorder %s202, %s203
    %p217 = scmp.eq.s32.totalorder %s29, 9
    %p218 = por %p216, %p217
    %p220 = scmp.ne.s32.totalorder %s203, %s219
    %p221 = scmp.eq.s32.totalorder %s29, 0
    %p222 = por %p220, %p221
    %p223 = scmp.le.s32.totalorder 1, %s23
    %p224 = scmp.lt.s32.totalorder %s23, 11
    %p225 = pnand %p223, %p224
    %p226 = pneg %p225
    // Predicated region
    $region9: #{moe_layer_pallas.1} parent=5 // pred_check
      _
    $region10: #{moe_layer_pallas.1} parent=5 // pred_check_branch
      %228 = sbr.rel (%p225) target = $region12
    $region11: #{moe_layer_pallas.1} parent=5 // pred_region
      %s229 = ssub.s32 %s23, 1
    $region12: #{moe_layer_pallas.1} parent=5 // pred_fallthru
      _
    %p230 = scmp.lt.s32.totalorder %s23, 10
    // Predicated region
    $region13: #{moe_layer_pallas.1} parent=5 // pred_check
      %p231 = pneg %p230
    $region14: #{moe_layer_pallas.1} parent=5 // pred_check_branch
      %233 = sbr.rel (%p231) target = $region16
    $region15: #{moe_layer_pallas.1} parent=5 // pred_region
      // Predicated region
      $region17: #{moe_layer_pallas.1} parent=15 // pred_check
        %p234 = pneg %p55
      $region18: #{moe_layer_pallas.1} parent=15 // pred_check_branch
        %236 = sbr.rel (%p234) target = $region20
      $region19: #{moe_layer_pallas.1} parent=15 // pred_region
        %s237 = smul.u32 2, %s30
        %p238 = scmp.lt.s32.totalorder %s237, 19
        %s239 = scalar_select %p238, %s237, 19
        %s240 = smul.addr %s239, 4
        %s241 = scalar_lea.vmem %s2, %s240
        %s242 = smul.u32 2, %s30
      $region20: #{moe_layer_pallas.1} parent=15 // pred_fallthru
        _
      // Predicated region
      $region21: #{moe_layer_pallas.1} parent=15 // pred_check
        %p243 = pneg %p81
      $region22: #{moe_layer_pallas.1} parent=15 // pred_check_branch
        %245 = sbr.rel (%p243) target = $region24
      $region23: #{moe_layer_pallas.1} parent=15 // pred_region
        %s246 = smul.u32 2, %s30
        %p247 = scmp.lt.s32.totalorder %s246, 19
        %s248 = scalar_select %p247, %s246, 19
        %s249 = smul.addr %s248, 8
        %s250 = scalar_lea.vmem %s3, %s249
        %s251 = smul.u32 2, %s30
      $region24: #{moe_layer_pallas.1} parent=15 // pred_fallthru
        _
      // Predicated region
      $region25: #{moe_layer_pallas.1} parent=15 // pred_check
        %p252 = pneg %p115
      $region26: #{moe_layer_pallas.1} parent=15 // pred_check_branch
        %254 = sbr.rel (%p252) target = $region28
      $region27: #{moe_layer_pallas.1} parent=15 // pred_region
        %s255 = sld [smem:[#allocation4 + %s30]]
        %s256 = sld [smem:[#allocation5 + %s30]]
        %s257 = smul.u32 %s31, %s256
        %s258 = smul.u32 2, %s257
        %p259 = scmp.lt.s32.totalorder %s255, 7
        %s260 = scalar_select %p259, %s255, 7
        %p261 = scmp.lt.s32.totalorder %s258, 1
        %s262 = scalar_select %p261, %s258, 1
        %s263 = smul.addr %s260, 32
        %s264 = sadd.s32 %s262, %s263
        %s265 = smul.addr %s264, 4
        %s266 = scalar_lea.vmem %s4, %s265
        %s267 = sld [smem:[#allocation4 + %s30]]
        %s268 = sld [smem:[#allocation5 + %s30]]
        %s269 = smul.u32 %s31, %s268
        %s270 = smul.u32 2, %s269
      $region28: #{moe_layer_pallas.1} parent=15 // pred_fallthru
        _
      // Predicated region
      $region29: #{moe_layer_pallas.1} parent=15 // pred_check
        %p271 = pneg %p149
      $region30: #{moe_layer_pallas.1} parent=15 // pred_check_branch
        %273 = sbr.rel (%p271) target = $region32
      $region31: #{moe_layer_pallas.1} parent=15 // pred_region
        %s274 = sld [smem:[#allocation4 + %s30]]
        %s275 = sld [smem:[#allocation5 + %s30]]
        %s276 = smul.u32 %s31, %s275
        %s277 = smul.u32 2, %s276
        %p278 = scmp.lt.s32.totalorder %s274, 7
        %s279 = scalar_select %p278, %s274, 7
        %p280 = scmp.lt.s32.totalorder %s277, 1
        %s281 = scalar_select %p280, %s277, 1
        %s282 = smul.addr %s279, 32
        %s283 = sadd.s32 %s281, %s282
        %s284 = smul.addr %s283, 4
        %s285 = scalar_lea.vmem %s5, %s284
        %s286 = sld [smem:[#allocation4 + %s30]]
        %s287 = sld [smem:[#allocation5 + %s30]]
        %s288 = smul.u32 %s31, %s287
        %s289 = smul.u32 2, %s288
      $region32: #{moe_layer_pallas.1} parent=15 // pred_fallthru
        _
      // Predicated region
      $region33: #{moe_layer_pallas.1} parent=15 // pred_check
        %p290 = pneg %p183
      $region34: #{moe_layer_pallas.1} parent=15 // pred_check_branch
        %292 = sbr.rel (%p290) target = $region36
      $region35: #{moe_layer_pallas.1} parent=15 // pred_region
        %s293 = sld [smem:[#allocation4 + %s30]]
        %s294 = sld [smem:[#allocation5 + %s30]]
        %s295 = smul.u32 %s31, %s294
        %s296 = smul.u32 32, %s295
        %p297 = scmp.lt.s32.totalorder %s293, 7
        %s298 = scalar_select %p297, %s293, 7
        %p299 = scmp.lt.s32.totalorder %s296, 31
        %s300 = scalar_select %p299, %s296, 31
        %s301 = smul.addr %s298, 32
        %s302 = sadd.s32 %s300, %s301
        %s303 = smul.addr %s302, 4
        %s304 = scalar_lea.vmem %s6, %s303
        %s305 = sld [smem:[#allocation4 + %s30]]
        %s306 = sld [smem:[#allocation5 + %s30]]
        %s307 = smul.u32 %s31, %s306
        %s308 = smul.u32 32, %s307
      $region36: #{moe_layer_pallas.1} parent=15 // pred_fallthru
        _
    $region16: #{moe_layer_pallas.1} parent=5 // pred_fallthru
      _
    %p309 = scmp.le.s32.totalorder 1, %s23
    %p310 = scmp.lt.s32.totalorder %s23, 11
    %p311 = pnand %p309, %p310
    %p312 = pneg %p311
    // Predicated region
    $region37: #{moe_layer_pallas.1} parent=5 // pred_check
      _
    $region38: #{moe_layer_pallas.1} parent=5 // pred_check_branch
      %314 = sbr.rel (%p311) target = $region40
    $region39: #{moe_layer_pallas.1} parent=5 // pred_region
      %s315 = ssub.s32 %s23, 1
      %s316 = smul.u32 2, %s32
      %p317 = scmp.lt.s32.totalorder %s316, 19
      %s318 = scalar_select %p317, %s316, 19
      %s319 = smul.addr %s318, 4
      %s320 = scalar_lea.vmem %s2, %s319
      %p321 = pneg %p61
      %p322 = pneg %p58
      %s323 = smul.u32 2, %s32
      %p324 = scmp.lt.s32.totalorder %s323, 19
      %s325 = scalar_select %p324, %s323, 19
      %s326 = smul.addr %s325, 8
      %s327 = scalar_lea.vmem %s3, %s326
      %p328 = pneg %p87
      %p329 = pneg %p84
      %s330 = sld [smem:[#allocation4 + %s32]]
      %s331 = sld [smem:[#allocation5 + %s32]]
      %s332 = smul.u32 %s33, %s331
      %s333 = smul.u32 2, %s332
      %p334 = scmp.lt.s32.totalorder %s330, 7
      %s335 = scalar_select %p334, %s330, 7
      %p336 = scmp.lt.s32.totalorder %s333, 1
      %s337 = scalar_select %p336, %s333, 1
      %s338 = smul.addr %s335, 32
      %s339 = sadd.s32 %s337, %s338
      %s340 = smul.addr %s339, 4
      %s341 = scalar_lea.vmem %s4, %s340
      %p342 = pneg %p121
      %p343 = pneg %p118
      %s344 = sld [smem:[#allocation4 + %s32]]
      %s345 = sld [smem:[#allocation5 + %s32]]
      %s346 = smul.u32 %s33, %s345
      %s347 = smul.u32 2, %s346
      %p348 = scmp.lt.s32.totalorder %s344, 7
      %s349 = scalar_select %p348, %s344, 7
      %p350 = scmp.lt.s32.totalorder %s347, 1
      %s351 = scalar_select %p350, %s347, 1
      %s352 = smul.addr %s349, 32
      %s353 = sadd.s32 %s351, %s352
      %s354 = smul.addr %s353, 4
      %s355 = scalar_lea.vmem %s5, %s354
      %p356 = pneg %p155
      %p357 = pneg %p152
      %s358 = sld [smem:[#allocation4 + %s32]]
      %s359 = sld [smem:[#allocation5 + %s32]]
      %s360 = smul.u32 %s33, %s359
      %s361 = smul.u32 32, %s360
      %p362 = scmp.lt.s32.totalorder %s358, 7
      %s363 = scalar_select %p362, %s358, 7
      %p364 = scmp.lt.s32.totalorder %s361, 31
      %s365 = scalar_select %p364, %s361, 31
      %s366 = smul.addr %s363, 32
      %s367 = sadd.s32 %s365, %s366
      %s368 = smul.addr %s367, 4
      %s369 = scalar_lea.vmem %s6, %s368
      %p370 = pneg %p189
      %p371 = pneg %p186
      %p372 = pneg %p215
      %p373 = pneg %p212
      %s374 = smul.u32 2, %s32
      %p375 = scmp.lt.s32.totalorder %s374, 19
      %s376 = scalar_select %p375, %s374, 19
      %s377 = smul.addr %s376, 4
      %s378 = scalar_lea.vmem %s7, %s377
      %s379 = smul.u32 2, %s32
      %p380 = scmp.lt.s32.totalorder %s379, 19
      %s381 = scalar_select %p380, %s379, 19
      %s382 = smul.addr %s381, 4
      %s383 = scalar_lea.vmem %s2, %s382
      %s384 = smul.u32 2, %s32
      %s385 = smul.u32 2, %s32
      %p386 = scmp.lt.s32.totalorder %s385, 19
      %s387 = scalar_select %p386, %s385, 19
      %s388 = smul.addr %s387, 8
      %s389 = scalar_lea.vmem %s3, %s388
      %s390 = smul.u32 2, %s32
      %s391 = sld [smem:[#allocation4 + %s32]]
      %s392 = sld [smem:[#allocation5 + %s32]]
      %s393 = smul.u32 %s33, %s392
      %s394 = smul.u32 2, %s393
      %p395 = scmp.lt.s32.totalorder %s391, 7
      %s396 = scalar_select %p395, %s391, 7
      %p397 = scmp.lt.s32.totalorder %s394, 1
      %s398 = scalar_select %p397, %s394, 1
      %s399 = smul.addr %s396, 32
      %s400 = sadd.s32 %s398, %s399
      %s401 = smul.addr %s400, 4
      %s402 = scalar_lea.vmem %s4, %s401
      %s403 = sld [smem:[#allocation4 + %s32]]
      %s404 = sld [smem:[#allocation5 + %s32]]
      %s405 = smul.u32 %s33, %s404
      %s406 = smul.u32 2, %s405
      %s407 = sld [smem:[#allocation4 + %s32]]
      %s408 = sld [smem:[#allocation5 + %s32]]
      %s409 = smul.u32 %s33, %s408
      %s410 = smul.u32 2, %s409
      %p411 = scmp.lt.s32.totalorder %s407, 7
      %s412 = scalar_select %p411, %s407, 7
      %p413 = scmp.lt.s32.totalorder %s410, 1
      %s414 = scalar_select %p413, %s410, 1
      %s415 = smul.addr %s412, 32
      %s416 = sadd.s32 %s414, %s415
      %s417 = smul.addr %s416, 4
      %s418 = scalar_lea.vmem %s5, %s417
      %s419 = sld [smem:[#allocation4 + %s32]]
      %s420 = sld [smem:[#allocation5 + %s32]]
      %s421 = smul.u32 %s33, %s420
      %s422 = smul.u32 2, %s421
      %s423 = sld [smem:[#allocation4 + %s32]]
      %s424 = sld [smem:[#allocation5 + %s32]]
      %s425 = smul.u32 %s33, %s424
      %s426 = smul.u32 32, %s425
      %p427 = scmp.lt.s32.totalorder %s423, 7
      %s428 = scalar_select %p427, %s423, 7
      %p429 = scmp.lt.s32.totalorder %s426, 31
      %s430 = scalar_select %p429, %s426, 31
      %s431 = smul.addr %s428, 32
      %s432 = sadd.s32 %s430, %s431
      %s433 = smul.addr %s432, 4
      %s434 = scalar_lea.vmem %s6, %s433
      %s435 = sld [smem:[#allocation4 + %s32]]
      %s436 = sld [smem:[#allocation5 + %s32]]
      %s437 = smul.u32 %s33, %s436
      %s438 = smul.u32 32, %s437
      %s439 = smul.u32 2, %s32
      %p440 = scmp.lt.s32.totalorder %s439, 19
      %s441 = scalar_select %p440, %s439, 19
      %s442 = smul.addr %s441, 4
      %s443 = scalar_lea.vmem %s7, %s442
      %s444 = smul.u32 2, %s32
      %p446 = scmp.eq.s32.totalorder %s33, 0
      // Predicated region
      $region41: #{moe_layer_pallas.1} parent=39 // pred_check
        %p447 = pneg %p446
      $region42: #{moe_layer_pallas.1} parent=39 // pred_check_branch
        %449 = sbr.rel (%p447) target = $region44
      $region43: #{moe_layer_pallas.1} parent=39 // pred_region
        %450 = vst [vmem:[#allocation2] sm:$0xff] 0.0
        %451 = vst [vmem:[#allocation2 + $0x8] sm:$0xff] 0.0
      $region44: #{moe_layer_pallas.1} parent=39 // pred_fallthru
        _
      %s452 = sld [smem:[#allocation5 + %s32]]
      %p453 = scmp.gt.s32.totalorder %s452, 0
      // Predicated region
      $region45: #{moe_layer_pallas.1} parent=39 // pred_check
        %p454 = pneg %p453
      $region46: #{moe_layer_pallas.1} parent=39 // pred_check_branch
        %456 = sbr.rel (%p454) target = $region48
      $region47: #{moe_layer_pallas.1} parent=39 // pred_region
        %v457 = vld [vmem:[%s383] sm:$0xf]
        %v458 = vld [vmem:[%s383 + $0x4] sm:$0xf]
        %v459 = vld [vmem:[%s402] sm:$0xff]
        %v460 = vld [vmem:[%s402 + $0x8] sm:$0xff]
        %v461 = vld [vmem:[%s402 + $0x10] sm:$0xff]
        %v462 = vld [vmem:[%s402 + $0x18] sm:$0xff]
        %v463 = vld [vmem:[%s402 + $0x20] sm:$0xff]
        %v464 = vld [vmem:[%s402 + $0x28] sm:$0xff]
        %v465 = vld [vmem:[%s402 + $0x30] sm:$0xff]
        %v466 = vld [vmem:[%s402 + $0x38] sm:$0xff]
        %v467 = vld [vmem:[%s402 + $0x40] sm:$0xff]
        %v468 = vld [vmem:[%s402 + $0x48] sm:$0xff]
        %v469 = vld [vmem:[%s402 + $0x50] sm:$0xff]
        %v470 = vld [vmem:[%s402 + $0x58] sm:$0xff]
        %v471 = vld [vmem:[%s402 + $0x60] sm:$0xff]
        %v472 = vld [vmem:[%s402 + $0x68] sm:$0xff]
        %v473 = vld [vmem:[%s402 + $0x70] sm:$0xff]
        %v474 = vld [vmem:[%s402 + $0x78] sm:$0xff]
        %v477 = vunpack.c.l.b16 %v457
        %v478 = vunpack.c.l.b16 %v458
        %v479 = vpack.c.b16 %v478, %v477
        %v497 = vunpack.c.l.b16 %v459
        %v498 = vunpack.c.h.b16 %v459
        %v499 = vunpack.c.l.b16 %v460
        %v500 = vunpack.c.h.b16 %v460
        %v501 = vunpack.c.l.b16 %v461
        %v502 = vunpack.c.h.b16 %v461
        %v503 = vunpack.c.l.b16 %v462
        %v504 = vunpack.c.h.b16 %v462
        %v505 = vunpack.c.l.b16 %v463
        %v506 = vunpack.c.h.b16 %v463
        %v507 = vunpack.c.l.b16 %v464
        %v508 = vunpack.c.h.b16 %v464
        %v509 = vunpack.c.l.b16 %v465
        %v510 = vunpack.c.h.b16 %v465
        %v511 = vunpack.c.l.b16 %v466
        %v512 = vunpack.c.h.b16 %v466
        %v513 = vunpack.c.l.b16 %v467
        %v514 = vunpack.c.h.b16 %v467
        %v515 = vunpack.c.l.b16 %v468
        %v516 = vunpack.c.h.b16 %v468
        %v517 = vunpack.c.l.b16 %v469
        %v518 = vunpack.c.h.b16 %v469
        %v519 = vunpack.c.l.b16 %v470
        %v520 = vunpack.c.h.b16 %v470
        %v521 = vunpack.c.l.b16 %v471
        %v522 = vunpack.c.h.b16 %v471
        %v523 = vunpack.c.l.b16 %v472
        %v524 = vunpack.c.h.b16 %v472
        %v525 = vunpack.c.l.b16 %v473
        %v526 = vunpack.c.h.b16 %v473
        %v527 = vunpack.c.l.b16 %v474
        %v528 = vunpack.c.h.b16 %v474
        %v529 = vpack.c.b16 %v499, %v497
        %v530 = vpack.c.b16 %v500, %v498
        %v531 = vpack.c.b16 %v503, %v501
        %v532 = vpack.c.b16 %v504, %v502
        %v533 = vpack.c.b16 %v507, %v505
        %v534 = vpack.c.b16 %v508, %v506
        %v535 = vpack.c.b16 %v511, %v509
        %v536 = vpack.c.b16 %v512, %v510
        %v537 = vpack.c.b16 %v515, %v513
        %v538 = vpack.c.b16 %v516, %v514
        %v539 = vpack.c.b16 %v519, %v517
        %v540 = vpack.c.b16 %v520, %v518
        %v541 = vpack.c.b16 %v523, %v521
        %v542 = vpack.c.b16 %v524, %v522
        %v543 = vpack.c.b16 %v527, %v525
        %v544 = vpack.c.b16 %v528, %v526
        %561 = vmatprep.subr.bf16.mxu0 %v530
        %562 = vmatpush1.bf16.msra.mxu0 %v529
        %563 = vmatprep.subr.bf16.mxu0 %v532
        %564 = vmatpush1.bf16.msra.mxu0 %v531
        %565 = vmatprep.subr.bf16.mxu0 %v534
        %566 = vmatpush1.bf16.msra.mxu0 %v533
        %567 = vmatprep.subr.bf16.mxu0 %v536
        %568 = vmatpush1.bf16.msra.mxu0 %v535
        %569 = vmatprep.subr.bf16.mxu0 %v538
        %570 = vmatpush1.bf16.msra.mxu0 %v537
        %571 = vmatprep.subr.bf16.mxu0 %v540
        %572 = vmatpush1.bf16.msra.mxu0 %v539
        %573 = vmatprep.subr.bf16.mxu0 %v542
        %574 = vmatpush1.bf16.msra.mxu0 %v541
        %575 = vmatprep.subr.bf16.mxu0 %v544
        %576 = vmatpush1.bf16.msra.mxu0 %v543
        %577 = vmatprep.subr.bf16.mxu0 0
        %578 = vmatpush1.bf16.msra.mxu0 0
        %579 = vmatprep.subr.bf16.mxu0 0
        %580 = vmatpush1.bf16.msra.mxu0 0
        %581 = vmatprep.subr.bf16.mxu0 0
        %582 = vmatpush1.bf16.msra.mxu0 0
        %583 = vmatprep.subr.bf16.mxu0 0
        %584 = vmatpush1.bf16.msra.mxu0 0
        %585 = vmatprep.subr.bf16.mxu0 0
        %586 = vmatpush1.bf16.msra.mxu0 0
        %587 = vmatprep.subr.bf16.mxu0 0
        %588 = vmatpush1.bf16.msra.mxu0 0
        %589 = vmatprep.subr.bf16.mxu0 0
        %590 = vmatpush1.bf16.msra.mxu0 0
        %591 = vmatprep.subr.bf16.mxu0 0
        %592 = vmatpush1.bf16.msra.mxu0 0
        %593 = vmatprep.mubr.bf16.mxu0 0
        %594 = vmatmul.mubr.bf16.gmra.mrb[0].mxu0 %v479
        %v595 = vpop.f32.mrb[0].mxu0
        %v596 = vadd.f32 0.0, %v595
        %v597 = vpop.f32.mrb[0].mxu0
        %v598 = vadd.f32 0.0, %v597
        %v599 = vpop.f32.mrb[0].mxu0
        %v600 = vadd.f32 0.0, %v599
        %v601 = vpop.f32.mrb[0].mxu0
        %v602 = vadd.f32 0.0, %v601
        %603 = vdwg.mxu0
        %v604 = vld [vmem:[%s418] sm:$0xff]
        %v605 = vld [vmem:[%s418 + $0x8] sm:$0xff]
        %v606 = vld [vmem:[%s418 + $0x10] sm:$0xff]
        %v607 = vld [vmem:[%s418 + $0x18] sm:$0xff]
        %v608 = vld [vmem:[%s418 + $0x20] sm:$0xff]
        %v609 = vld [vmem:[%s418 + $0x28] sm:$0xff]
        %v610 = vld [vmem:[%s418 + $0x30] sm:$0xff]
        %v611 = vld [vmem:[%s418 + $0x38] sm:$0xff]
        %v612 = vld [vmem:[%s418 + $0x40] sm:$0xff]
        %v613 = vld [vmem:[%s418 + $0x48] sm:$0xff]
        %v614 = vld [vmem:[%s418 + $0x50] sm:$0xff]
        %v615 = vld [vmem:[%s418 + $0x58] sm:$0xff]
        %v616 = vld [vmem:[%s418 + $0x60] sm:$0xff]
        %v617 = vld [vmem:[%s418 + $0x68] sm:$0xff]
        %v618 = vld [vmem:[%s418 + $0x70] sm:$0xff]
        %v619 = vld [vmem:[%s418 + $0x78] sm:$0xff]
        %v636 = vunpack.c.l.b16 %v604
        %v637 = vunpack.c.h.b16 %v604
        %v638 = vunpack.c.l.b16 %v605
        %v639 = vunpack.c.h.b16 %v605
        %v640 = vunpack.c.l.b16 %v606
        %v641 = vunpack.c.h.b16 %v606
        %v642 = vunpack.c.l.b16 %v607
        %v643 = vunpack.c.h.b16 %v607
        %v644 = vunpack.c.l.b16 %v608
        %v645 = vunpack.c.h.b16 %v608
        %v646 = vunpack.c.l.b16 %v609
        %v647 = vunpack.c.h.b16 %v609
        %v648 = vunpack.c.l.b16 %v610
        %v649 = vunpack.c.h.b16 %v610
        %v650 = vunpack.c.l.b16 %v611
        %v651 = vunpack.c.h.b16 %v611
        %v652 = vunpack.c.l.b16 %v612
        %v653 = vunpack.c.h.b16 %v612
        %v654 = vunpack.c.l.b16 %v613
        %v655 = vunpack.c.h.b16 %v613
        %v656 = vunpack.c.l.b16 %v614
        %v657 = vunpack.c.h.b16 %v614
        %v658 = vunpack.c.l.b16 %v615
        %v659 = vunpack.c.h.b16 %v615
        %v660 = vunpack.c.l.b16 %v616
        %v661 = vunpack.c.h.b16 %v616
        %v662 = vunpack.c.l.b16 %v617
        %v663 = vunpack.c.h.b16 %v617
        %v664 = vunpack.c.l.b16 %v618
        %v665 = vunpack.c.h.b16 %v618
        %v666 = vunpack.c.l.b16 %v619
        %v667 = vunpack.c.h.b16 %v619
        %v668 = vpack.c.b16 %v638, %v636
        %v669 = vpack.c.b16 %v639, %v637
        %v670 = vpack.c.b16 %v642, %v640
        %v671 = vpack.c.b16 %v643, %v641
        %v672 = vpack.c.b16 %v646, %v644
        %v673 = vpack.c.b16 %v647, %v645
        %v674 = vpack.c.b16 %v650, %v648
        %v675 = vpack.c.b16 %v651, %v649
        %v676 = vpack.c.b16 %v654, %v652
        %v677 = vpack.c.b16 %v655, %v653
        %v678 = vpack.c.b16 %v658, %v656
        %v679 = vpack.c.b16 %v659, %v657
        %v680 = vpack.c.b16 %v662, %v660
        %v681 = vpack.c.b16 %v663, %v661
        %v682 = vpack.c.b16 %v666, %v664
        %v683 = vpack.c.b16 %v667, %v665
        %700 = vmatprep.subr.bf16.mxu0 %v669
        %701 = vmatpush1.bf16.msra.mxu0 %v668
        %702 = vmatprep.subr.bf16.mxu0 %v671
        %703 = vmatpush1.bf16.msra.mxu0 %v670
        %704 = vmatprep.subr.bf16.mxu0 %v673
        %705 = vmatpush1.bf16.msra.mxu0 %v672
        %706 = vmatprep.subr.bf16.mxu0 %v675
        %707 = vmatpush1.bf16.msra.mxu0 %v674
        %708 = vmatprep.subr.bf16.mxu0 %v677
        %709 = vmatpush1.bf16.msra.mxu0 %v676
        %710 = vmatprep.subr.bf16.mxu0 %v679
        %711 = vmatpush1.bf16.msra.mxu0 %v678
        %712 = vmatprep.subr.bf16.mxu0 %v681
        %713 = vmatpush1.bf16.msra.mxu0 %v680
        %714 = vmatprep.subr.bf16.mxu0 %v683
        %715 = vmatpush1.bf16.msra.mxu0 %v682
        %716 = vmatprep.subr.bf16.mxu0 0
        %717 = vmatpush1.bf16.msra.mxu0 0
        %718 = vmatprep.subr.bf16.mxu0 0
        %719 = vmatpush1.bf16.msra.mxu0 0
        %720 = vmatprep.subr.bf16.mxu0 0
        %721 = vmatpush1.bf16.msra.mxu0 0
        %722 = vmatprep.subr.bf16.mxu0 0
        %723 = vmatpush1.bf16.msra.mxu0 0
        %724 = vmatprep.subr.bf16.mxu0 0
        %725 = vmatpush1.bf16.msra.mxu0 0
        %726 = vmatprep.subr.bf16.mxu0 0
        %727 = vmatpush1.bf16.msra.mxu0 0
        %728 = vmatprep.subr.bf16.mxu0 0
        %729 = vmatpush1.bf16.msra.mxu0 0
        %730 = vmatprep.subr.bf16.mxu0 0
        %731 = vmatpush1.bf16.msra.mxu0 0
        %732 = vmatprep.mubr.bf16.mxu0 0
        %733 = vmatmul.mubr.bf16.gmra.mrb[0].mxu0 %v479
        %v734 = vpop.f32.mrb[0].mxu0
        %v735 = vadd.f32 0.0, %v734
        %v736 = vpop.f32.mrb[0].mxu0
        %v737 = vadd.f32 0.0, %v736
        %v738 = vpop.f32.mrb[0].mxu0
        %v739 = vadd.f32 0.0, %v738
        %v740 = vpop.f32.mrb[0].mxu0
        %v741 = vadd.f32 0.0, %v740
        %742 = vdwg.mxu0
        %v743 = vxor.u32 %v596, 2147483648
        %v744 = vxor.u32 %v598, 2147483648
        %v745 = vxor.u32 %v600, 2147483648
        %v746 = vxor.u32 %v602, 2147483648
        %v747 = vmul.f32 %v743, 1.442695
        %v748 = vpow.pop %v747
        %v749 = vmul.f32 %v744, 1.442695
        %v750 = vpow.pop %v749
        %v751 = vmul.f32 %v745, 1.442695
        %v752 = vpow.pop %v751
        %v753 = vmul.f32 %v746, 1.442695
        %v754 = vpow.pop %v753
        %v755 = vadd.f32 %v748, 1.0
        %v756 = vadd.f32 %v750, 1.0
        %v757 = vadd.f32 %v752, 1.0
        %v758 = vadd.f32 %v754, 1.0
        %v759 = vrcp.pop %v755
        %v760 = vmul.f32 1.0, %v759
        %v761 = vrcp.pop %v756
        %v762 = vmul.f32 1.0, %v761
        %v763 = vrcp.pop %v757
        %v764 = vmul.f32 1.0, %v763
        %v765 = vrcp.pop %v758
        %v766 = vmul.f32 1.0, %v765
        %v767 = vmul.f32 %v596, %v760
        %v768 = vmul.f32 %v598, %v762
        %v769 = vmul.f32 %v600, %v764
        %v770 = vmul.f32 %v602, %v766
        %v771 = vmul.f32 %v767, %v735
        %v772 = vmul.f32 %v768, %v737
        %v773 = vmul.f32 %v769, %v739
        %v774 = vmul.f32 %v770, %v741
        %v775 = vld [vmem:[#allocation2] sm:$0xff]
        %v776 = vld [vmem:[#allocation2 + $0x8] sm:$0xff]
        %v777 = vpack.c.bf16 %v773, %v771
        %v778 = vpack.c.bf16 %v774, %v772
        %v779 = vld [vmem:[%s434] sm:$0xf]
        %v780 = vld [vmem:[%s434 + $0x4] sm:$0xf]
        %v781 = vld [vmem:[%s434 + $0x8] sm:$0xf]
        %v782 = vld [vmem:[%s434 + $0xc] sm:$0xf]
        %v783 = vld [vmem:[%s434 + $0x10] sm:$0xf]
        %v784 = vld [vmem:[%s434 + $0x14] sm:$0xf]
        %v785 = vld [vmem:[%s434 + $0x18] sm:$0xf]
        %v786 = vld [vmem:[%s434 + $0x1c] sm:$0xf]
        %v787 = vld [vmem:[%s434 + $0x20] sm:$0xf]
        %v788 = vld [vmem:[%s434 + $0x24] sm:$0xf]
        %v789 = vld [vmem:[%s434 + $0x28] sm:$0xf]
        %v790 = vld [vmem:[%s434 + $0x2c] sm:$0xf]
        %v791 = vld [vmem:[%s434 + $0x30] sm:$0xf]
        %v792 = vld [vmem:[%s434 + $0x34] sm:$0xf]
        %v793 = vld [vmem:[%s434 + $0x38] sm:$0xf]
        %v794 = vld [vmem:[%s434 + $0x3c] sm:$0xf]
        %v795 = vld [vmem:[%s434 + $0x40] sm:$0xf]
        %v796 = vld [vmem:[%s434 + $0x44] sm:$0xf]
        %v797 = vld [vmem:[%s434 + $0x48] sm:$0xf]
        %v798 = vld [vmem:[%s434 + $0x4c] sm:$0xf]
        %v799 = vld [vmem:[%s434 + $0x50] sm:$0xf]
        %v800 = vld [vmem:[%s434 + $0x54] sm:$0xf]
        %v801 = vld [vmem:[%s434 + $0x58] sm:$0xf]
        %v802 = vld [vmem:[%s434 + $0x5c] sm:$0xf]
        %v803 = vld [vmem:[%s434 + $0x60] sm:$0xf]
        %v804 = vld [vmem:[%s434 + $0x64] sm:$0xf]
        %v805 = vld [vmem:[%s434 + $0x68] sm:$0xf]
        %v806 = vld [vmem:[%s434 + $0x6c] sm:$0xf]
        %v807 = vld [vmem:[%s434 + $0x70] sm:$0xf]
        %v808 = vld [vmem:[%s434 + $0x74] sm:$0xf]
        %v809 = vld [vmem:[%s434 + $0x78] sm:$0xf]
        %v810 = vld [vmem:[%s434 + $0x7c] sm:$0xf]
        %v843 = vunpack.c.l.b16 %v779
        %v844 = vunpack.c.l.b16 %v780
        %v845 = vunpack.c.l.b16 %v781
        %v846 = vunpack.c.l.b16 %v782
        %v847 = vunpack.c.l.b16 %v783
        %v848 = vunpack.c.l.b16 %v784
        %v849 = vunpack.c.l.b16 %v785
        %v850 = vunpack.c.l.b16 %v786
        %v851 = vunpack.c.l.b16 %v787
        %v852 = vunpack.c.l.b16 %v788
        %v853 = vunpack.c.l.b16 %v789
        %v854 = vunpack.c.l.b16 %v790
        %v855 = vunpack.c.l.b16 %v791
        %v856 = vunpack.c.l.b16 %v792
        %v857 = vunpack.c.l.b16 %v793
        %v858 = vunpack.c.l.b16 %v794
        %v859 = vunpack.c.l.b16 %v795
        %v860 = vunpack.c.l.b16 %v796
        %v861 = vunpack.c.l.b16 %v797
        %v862 = vunpack.c.l.b16 %v798
        %v863 = vunpack.c.l.b16 %v799
        %v864 = vunpack.c.l.b16 %v800
        %v865 = vunpack.c.l.b16 %v801
        %v866 = vunpack.c.l.b16 %v802
        %v867 = vunpack.c.l.b16 %v803
        %v868 = vunpack.c.l.b16 %v804
        %v869 = vunpack.c.l.b16 %v805
        %v870 = vunpack.c.l.b16 %v806
        %v871 = vunpack.c.l.b16 %v807
        %v872 = vunpack.c.l.b16 %v808
        %v873 = vunpack.c.l.b16 %v809
        %v874 = vunpack.c.l.b16 %v810
        %v875 = vpack.c.b16 %v844, %v843
        %v876 = vpack.c.b16 %v846, %v845
        %v877 = vpack.c.b16 %v848, %v847
        %v878 = vpack.c.b16 %v850, %v849
        %v879 = vpack.c.b16 %v852, %v851
        %v880 = vpack.c.b16 %v854, %v853
        %v881 = vpack.c.b16 %v856, %v855
        %v882 = vpack.c.b16 %v858, %v857
        %v883 = vpack.c.b16 %v860, %v859
        %v884 = vpack.c.b16 %v862, %v861
        %v885 = vpack.c.b16 %v864, %v863
        %v886 = vpack.c.b16 %v866, %v865
        %v887 = vpack.c.b16 %v868, %v867
        %v888 = vpack.c.b16 %v870, %v869
        %v889 = vpack.c.b16 %v872, %v871
        %v890 = vpack.c.b16 %v874, %v873
        %907 = vmatprep.subr.bf16.mxu0 0
        %908 = vmatpush1.bf16.msra.mxu0 %v875
        %909 = vmatprep.subr.bf16.mxu0 0
        %910 = vmatpush1.bf16.msra.mxu0 %v876
        %911 = vmatprep.subr.bf16.mxu0 0
        %912 = vmatpush1.bf16.msra.mxu0 %v877
        %913 = vmatprep.subr.bf16.mxu0 0
        %914 = vmatpush1.bf16.msra.mxu0 %v878
        %915 = vmatprep.subr.bf16.mxu0 0
        %916 = vmatpush1.bf16.msra.mxu0 %v879
        %917 = vmatprep.subr.bf16.mxu0 0
        %918 = vmatpush1.bf16.msra.mxu0 %v880
        %919 = vmatprep.subr.bf16.mxu0 0
        %920 = vmatpush1.bf16.msra.mxu0 %v881
        %921 = vmatprep.subr.bf16.mxu0 0
        %922 = vmatpush1.bf16.msra.mxu0 %v882
        %923 = vmatprep.subr.bf16.mxu0 0
        %924 = vmatpush1.bf16.msra.mxu0 %v883
        %925 = vmatprep.subr.bf16.mxu0 0
        %926 = vmatpush1.bf16.msra.mxu0 %v884
        %927 = vmatprep.subr.bf16.mxu0 0
        %928 = vmatpush1.bf16.msra.mxu0 %v885
        %929 = vmatprep.subr.bf16.mxu0 0
        %930 = vmatpush1.bf16.msra.mxu0 %v886
        %931 = vmatprep.subr.bf16.mxu0 0
        %932 = vmatpush1.bf16.msra.mxu0 %v887
        %933 = vmatprep.subr.bf16.mxu0 0
        %934 = vmatpush1.bf16.msra.mxu0 %v888
        %935 = vmatprep.subr.bf16.mxu0 0
        %936 = vmatpush1.bf16.msra.mxu0 %v889
        %937 = vmatprep.subr.bf16.mxu0 0
        %938 = vmatpush1.bf16.msra.mxu0 %v890
        %939 = vmatprep.mubr.bf16.mxu0 %v778
        %940 = vmatmul.mubr.bf16.gmra.mrb[0].mxu0 %v777
        %v941 = vpop.f32.mrb[0].mxu0
        %v942 = vadd.f32 0.0, %v941
        %v943 = vpop.f32.mrb[0].mxu0
        %v944 = vpop.f32.mrb[0].mxu0
        %v945 = vadd.f32 0.0, %v944
        %v946 = vpop.f32.mrb[0].mxu0
        %947 = vdwg.mxu0
        %v948 = vadd.f32 %v775, %v942
        %v949 = vadd.f32 %v776, %v945
        %950 = vst [vmem:[#allocation2] sm:$0xff] %v948
        %951 = vst [vmem:[#allocation2 + $0x8] sm:$0xff] %v949
      $region48: #{moe_layer_pallas.1} parent=39 // pred_fallthru
        _
      // Predicated region
      $region49: #{moe_layer_pallas.1} parent=39 // pred_check
        %p952 = pneg %p446
      $region50: #{moe_layer_pallas.1} parent=39 // pred_check_branch
        %954 = sbr.rel (%p952) target = $region52
      $region51: #{moe_layer_pallas.1} parent=39 // pred_region
        %v955 = vld [vmem:[#allocation2] sm:$0xff]
        %v956 = vld [vmem:[#allocation2 + $0x8] sm:$0xff]
        %v957 = vld [vmem:[%s389] sm:$0xff]
        %v958 = vld [vmem:[%s389 + $0x8] sm:$0xff]
        %960 = vset.pattern.permute.xlu0 0
        %961 = vperm.xlu0 %960, %v957
        %v962 = vpop.permute.xlu0 %961
        %965 = vset.pattern.permute.xlu0 0
        %966 = vperm.xlu0 %965, %v958
        %v967 = vpop.permute.xlu0 %966
        %v969 = vmul.f32 %v955, %v962
        %v970 = vmul.f32 %v956, %v967
        %v971 = vpack.c.bf16 %v970, %v969
        %v973 = vunpack.c.l.b16 %v971
        %v974 = vunpack.c.h.b16 %v971
        %v975 = vpack.c.b16 %v973, %v973
        %v976 = vpack.c.b16 %v974, %v974
        %979 = vst [vmem:[%s443] sm:$0xf] %v975
        %980 = vst [vmem:[%s443 + $0x4] sm:$0xf] %v976
      $region52: #{moe_layer_pallas.1} parent=39 // pred_fallthru
        _
      %s981 = smul.u32 2, %s32
      %p982 = scmp.lt.s32.totalorder %s981, 19
      %s983 = scalar_select %p982, %s981, 19
      %s984 = smul.addr %s983, 4
      %s985 = scalar_lea.vmem %s7, %s984
      // Predicated region
      $region53: #{moe_layer_pallas.1} parent=39 // pred_check
        %p986 = pneg %p212
      $region54: #{moe_layer_pallas.1} parent=39 // pred_check_branch
        %988 = sbr.rel (%p986) target = $region56
      $region55: #{moe_layer_pallas.1} parent=39 // pred_region
        %s989 = smul.u32 2, %s32
      $region56: #{moe_layer_pallas.1} parent=39 // pred_fallthru
        _
    $region40: #{moe_layer_pallas.1} parent=5 // pred_fallthru
      _
    %p990 = scmp.le.s32.totalorder 2, %s23
    // Predicated region
    $region57: #{moe_layer_pallas.1} parent=5 // pred_check
      %p991 = pneg %p990
    $region58: #{moe_layer_pallas.1} parent=5 // pred_check_branch
      %993 = sbr.rel (%p991) target = $region60
    $region59: #{moe_layer_pallas.1} parent=5 // pred_region
      %s994 = ssub.s32 %s23, 2
      // Predicated region
      $region61: #{moe_layer_pallas.1} parent=59 // pred_check
        %p995 = pneg %p218
      $region62: #{moe_layer_pallas.1} parent=59 // pred_check_branch
        %997 = sbr.rel (%p995) target = $region64
      $region63: #{moe_layer_pallas.1} parent=59 // pred_region
        %s998 = smul.u32 2, %s34
        %p999 = scmp.lt.s32.totalorder %s998, 19
        %s1000 = scalar_select %p999, %s998, 19
        %s1001 = smul.addr %s1000, 4
        %s1002 = scalar_lea.vmem %s7, %s1001
      $region64: #{moe_layer_pallas.1} parent=59 // pred_fallthru
        _
    $region60: #{moe_layer_pallas.1} parent=5 // pred_fallthru
      _
  $region6: #{moe_layer_pallas.1} parent=0 // loop_footer
    %s27 = sadd.s32 1, %s23
  $region7: #{moe_layer_pallas.1} parent=0 // loop_footer_branch
    %22 = sbr.rel target = $region3
  $region8: #{moe_layer_pallas.1} parent=0 // loop_exit
    _

</llo_original>
